<compile_context>
chip_gen: v5e
topology: v5e:2x2
jax: 0.10.0
libtpu: 0.0.40
codegen_flags: <defaults>
</compile_context>

<pallas_src>
import math

import jax
import jax.numpy as jnp
from jax.experimental import pallas as pl
from jax.experimental.pallas import tpu as pltpu


# --------------------------------------------------------------------------
# helpers
# --------------------------------------------------------------------------
def _round_up(x, m):
    return ((x + m - 1) // m) * m


def _cdiv(a, b):
    return -(-a // b)


def _choose_tile(dim, align, cap):
    """Full aligned extent if it fits under `cap`, else an aligned near-even
    split so explicit zero-padding stays small (handles prime dims safely)."""
    da = _round_up(dim, align)
    if da <= cap:
        return da
    nblk = _cdiv(da, cap)
    return _round_up(_cdiv(da, nblk), align)


def _vmem_capacity_bytes():
    try:
        return int(pltpu.get_tpu_info().vmem_capacity_bytes)
    except Exception:
        return 64 * 1024 * 1024        # conservative (v7x per-core VMEM)


def _make_finalize(scale, activation):
    neg_slope = 0.2
    gain = math.sqrt(2.0)

    def finalize(acc_f32, bias_f32):
        out = acc_f32 * scale                      # equalized-lr weight scale
        if bias_f32 is not None:
            out = out + bias_f32                   # bias already * lr_mul
        if activation:                             # fused_leaky_relu epilogue
            out = jnp.where(out >= 0.0, out, neg_slope * out) * gain
        return out

    return finalize


# --------------------------------------------------------------------------
# kernels
# --------------------------------------------------------------------------
def _resident_kernel(scale, activation, has_bias):
    """Whole weight resident in VMEM; 1-D grid over M. No K reduction axis."""
    finalize = _make_finalize(scale, activation)

    if has_bias:
        def kernel(x_ref, w_ref, b_ref, o_ref):
            acc = jnp.dot(x_ref[...], w_ref[...],
                          preferred_element_type=jnp.float32)
            o_ref[...] = finalize(acc, b_ref[...].astype(jnp.float32)).astype(o_ref.dtype)
    else:
        def kernel(x_ref, w_ref, o_ref):
            acc = jnp.dot(x_ref[...], w_ref[...],
                          preferred_element_type=jnp.float32)
            o_ref[...] = finalize(acc, None).astype(o_ref.dtype)
    return kernel


def _tiled_kernel(scale, activation, has_bias, use_scratch):
    """Classic (M, N, K) tiled matmul; accumulate directly into the resident
    f32 output block, or into a VMEM scratch for narrow output dtypes."""
    finalize = _make_finalize(scale, activation)

    def step(x_ref, w_ref, b_ref, o_ref, acc_ref):
        k = pl.program_id(2)
        acc = acc_ref if acc_ref is not None else o_ref

        @pl.when(k == 0)
        def _():
            acc[...] = jnp.zeros_like(acc)

        acc[...] += jnp.dot(x_ref[...], w_ref[...],
                            preferred_element_type=jnp.float32)

        @pl.when(k == pl.num_programs(2) - 1)
        def _():
            b = b_ref[...].astype(jnp.float32) if b_ref is not None else None
            o_ref[...] = finalize(acc[...], b).astype(o_ref.dtype)

    if has_bias and use_scratch:
        def kernel(x_ref, w_ref, b_ref, o_ref, acc_ref):
            step(x_ref, w_ref, b_ref, o_ref, acc_ref)
    elif has_bias:
        def kernel(x_ref, w_ref, b_ref, o_ref):
            step(x_ref, w_ref, b_ref, o_ref, None)
    elif use_scratch:
        def kernel(x_ref, w_ref, o_ref, acc_ref):
            step(x_ref, w_ref, None, o_ref, acc_ref)
    else:
        def kernel(x_ref, w_ref, o_ref):
            step(x_ref, w_ref, None, o_ref, None)
    return kernel


# --------------------------------------------------------------------------
# wrapper
# --------------------------------------------------------------------------
def equal_linear_pallas(x, weight, bias=None, *, lr_mul=1.0, activation=None,
                        _force_tiled=False):
    """EqualLinear.forward(x) with `weight` (out_dim, in_dim), `bias` (out_dim,)."""
    out_dim, in_dim = weight.shape
    orig_shape = x.shape
    assert orig_shape[-1] == in_dim, (orig_shape, weight.shape)
    if activation:
        # The PyTorch module always feeds a bias into fused_leaky_relu.
        assert bias is not None, "activation path requires a bias"

    M = 1
    for d in orig_shape[:-1]:
        M *= int(d)
    K, N = in_dim, out_dim

    x2 = x.reshape(M, K)
    dtype = x2.dtype
    isz = jnp.dtype(dtype).itemsize
    scale = (1.0 / math.sqrt(in_dim)) * lr_mul
    has_bias = bias is not None

    # One-time wrapper-side prep (layout plumbing, not compute):
    #   weight -> (K, N) so the kernel is a plain row-major MXU contraction,
    #   bias   -> bias * lr_mul as a (1, N) f32 row.
    w_t = jnp.transpose(weight).astype(dtype)
    bias_eff = (bias.astype(jnp.float32) * lr_mul).reshape(1, N) if has_bias else None

    vmem_cap = _vmem_capacity_bytes()
    budget = vmem_cap // 2                       # headroom for pipelining/compiler

    kp_full = _round_up(K, 128)                  # lane dim of x / sublane of w_t
    np_full = _round_up(N, 128)                  # lane dim of w_t / out (lane-dense)
    w_bytes = kp_full * np_full * isz
    resident = (not _force_tiled) and (w_bytes <= min(8 * 1024 * 1024, budget // 4))

    if resident:
        # ------------------- weight-resident fast path -------------------
        Kp, Np = kp_full, np_full
        tm = _choose_tile(M, 8, 512)
        Mp = _round_up(M, tm)
        # Give v7x's second TensorCore work on large-M problems.
        if Mp // tm < 2 and M >= 256:
            tm = _round_up(_cdiv(Mp, 2), 8)
            Mp = _round_up(M, tm)

        def ws_resident(tm_):
            return (2 * w_bytes + 2 * tm_ * Kp * isz
                    + 2 * tm_ * Np * isz + 2 * Np * 4)

        while tm > 8 and ws_resident(tm) > budget:
            tm = max(8, _round_up(tm // 2, 8))
        Mp = _round_up(M, tm)
        ws = ws_resident(tm)

        grid = (Mp // tm,)
        in_specs = [pl.BlockSpec((tm, Kp), lambda i: (i, 0)),
                    pl.BlockSpec((Kp, Np), lambda i: (0, 0))]   # constant -> DMA'd once
        out_spec = pl.BlockSpec((tm, Np), lambda i: (i, 0))
        scratch = []
        dim_sem = ("parallel",)
        kernel = _resident_kernel(scale, activation, has_bias)
        bias_spec = pl.BlockSpec((1, Np), lambda i: (0, 0))
    else:
        # ------------------------ tiled fallback --------------------------
        tm = _choose_tile(M, 8, 512)
        tn = _choose_tile(N, 128, 1024)
        tk = _choose_tile(K, 128, 512)
        use_scratch = dtype != jnp.float32

        def ws_tiled(tm_, tn_, tk_):
            ws_ = (2 * (tm_ * tk_ + tk_ * tn_) * isz
                   + 2 * tm_ * tn_ * isz + 2 * tn_ * 4)
            if use_scratch:
                ws_ += tm_ * tn_ * 4
            return ws_

        while ws_tiled(tm, tn, tk) > budget and tk > 128:
            tk = max(128, _round_up(tk // 2, 128))
        while ws_tiled(tm, tn, tk) > budget and tn > 128:
            tn = max(128, _round_up(tn // 2, 128))
        while ws_tiled(tm, tn, tk) > budget and tm > 8:
            tm = max(8, _round_up(tm // 2, 8))
        ws = ws_tiled(tm, tn, tk)

        Mp, Np, Kp = _round_up(M, tm), _round_up(N, tn), _round_up(K, tk)
        grid = (Mp // tm, Np // tn, Kp // tk)
        in_specs = [pl.BlockSpec((tm, tk), lambda i, j, k: (i, k)),
                    pl.BlockSpec((tk, tn), lambda i, j, k: (k, j))]
        out_spec = pl.BlockSpec((tm, tn), lambda i, j, k: (i, j))
        scratch = [pltpu.VMEM((tm, tn), jnp.float32)] if use_scratch else []
        dim_sem = ("parallel", "parallel", "arbitrary")
        kernel = _tiled_kernel(scale, activation, has_bias, use_scratch)
        bias_spec = pl.BlockSpec((1, tn), lambda i, j, k: (0, j))
        # TODO(synk): if a trace shows exposed weight DMA on v6e (deep K grid,
        # small tm), add pipeline_mode=pl.Buffered(3) on the x/w specs.

    # ---- explicit zero-padding (K pads contribute 0; M/N pads sliced off) ----
    xp = x2 if (Mp, Kp) == (M, K) else jnp.pad(x2, ((0, Mp - M), (0, Kp - K)))
    wp = w_t if (Kp, Np) == (K, N) else jnp.pad(w_t, ((0, Kp - K), (0, Np - N)))
    args = [xp, wp]
    if has_bias:
        bp = bias_eff if Np == N else jnp.pad(bias_eff, ((0, 0), (0, Np - N)))
        in_specs.append(bias_spec)
        args.append(bp)

    vmem_limit = int(min(vmem_cap * 3 // 4, max(32 * 1024 * 1024, ws * 2)))

    out2 = pl.pallas_call(
        kernel,
        out_shape=jax.ShapeDtypeStruct((Mp, Np), dtype),
        grid_spec=pltpu.PrefetchScalarGridSpec(
            num_scalar_prefetch=0,
            grid=grid,
            in_specs=in_specs,
            out_specs=out_spec,
            scratch_shapes=scratch,
        ),
        compiler_params=pltpu.CompilerParams(
            dimension_semantics=dim_sem,
            vmem_limit_bytes=vmem_limit,
        ),
    )(*args)

    out2 = out2[:M, :N]
    return out2.reshape(*orig_shape[:-1], N)


# --------------------------------------------------------------------------
# pure-JAX reference + self-test
# --------------------------------------------------------------------------
def _equal_linear_ref(x, weight, bias, lr_mul, activation):
    in_dim = weight.shape[1]
    scale = (1.0 / math.sqrt(in_dim)) * lr_mul
    out = x @ (weight * scale).T
    if activation:
        out = out + bias * lr_mul
        out = jnp.where(out >= 0.0, out, 0.2 * out) * math.sqrt(2.0)
    elif bias is not None:
        out = out + bias * lr_mul
    return out


if __name__ == "__main__":
    key = jax.random.PRNGKey(0)
    k1, k2, _ = jax.random.split(key, 3)

    batch, seq, in_dim, out_dim = 2, 8, 32, 64
    lr_mul = 0.5

    x = jax.random.normal(k1, (batch, seq, in_dim), dtype=jnp.float32)
    weight = jax.random.normal(k2, (out_dim, in_dim), dtype=jnp.float32) / lr_mul
    bias = jnp.full((out_dim,), 0.1, dtype=jnp.float32)

    # 1) plain linear + bias, weight-resident path.
    out_lin = jax.block_until_ready(
        equal_linear_pallas(x, weight, bias, lr_mul=lr_mul, activation=None))
    ref_lin = _equal_linear_ref(x, weight, bias, lr_mul, None)
    assert out_lin.shape == ref_lin.shape
    assert jnp.allclose(out_lin, ref_lin, atol=1e-4, rtol=1e-4), "linear branch mismatch"

    # 2) fused leaky-relu branch, weight-resident path.
    out_act = jax.block_until_ready(
        equal_linear_pallas(x, weight, bias, lr_mul=lr_mul, activation="fused_lrelu"))
    ref_act = _equal_linear_ref(x, weight, bias, lr_mul, "fused_lrelu")
    assert jnp.allclose(out_act, ref_act, atol=1e-4, rtol=1e-4), "fused_lrelu mismatch"

    # 3) tiled fallback path (forced), f32 accumulate-into-output.
    out_t = jax.block_until_ready(
        equal_linear_pallas(x, weight, bias, lr_mul=lr_mul, activation="fused_lrelu",
                            _force_tiled=True))
    assert jnp.allclose(out_t, ref_act, atol=1e-4, rtol=1e-4), "tiled path mismatch"

    # 4) bf16 inputs through the tiled path (exercises the f32 scratch accumulator).
    out_bf = jax.block_until_ready(
        equal_linear_pallas(x.astype(jnp.bfloat16), weight, bias, lr_mul=lr_mul,
                            activation=None, _force_tiled=True))
    assert out_bf.dtype == jnp.bfloat16
    assert jnp.allclose(out_bf.astype(jnp.float32), ref_lin, atol=0.1, rtol=0.1), \
        "bf16 tiled path mismatch"

    # 5) small-N head (out_dim=1): wrapper pads N to 128 -> lane-dense stores.
    w1 = weight[:1]
    b1 = bias[:1]
    out_1 = jax.block_until_ready(
        equal_linear_pallas(x, w1, b1, lr_mul=lr_mul, activation=None))
    ref_1 = _equal_linear_ref(x, w1, b1, lr_mul, None)
    assert out_1.shape == ref_1.shape
    assert jnp.allclose(out_1, ref_1, atol=1e-4, rtol=1e-4), "out_dim=1 mismatch"

    print("KERNEL_OK")
</pallas_src>

<mosaic_0001>
module attributes {stable_mosaic.version = 11 : i64} {
  func.func @kernel(%arg0: i32, %arg1: memref<16x128xf32, #tpu.memory_space<vmem>>, %arg2: memref<128x128xf32, #tpu.memory_space<vmem>>, %arg3: memref<1x128xf32, #tpu.memory_space<vmem>>, %arg4: memref<16x128xf32, #tpu.memory_space<vmem>>) attributes {dimension_semantics = [#tpu.dimension_semantics<parallel>], iteration_bounds = array<i64: 1>, scalar_prefetch = 0 : i64, scratch_operands = 0 : i64, tpu.core_type = #tpu.core_type<tc>, window_params = [{transform_indices = @transform_0, window_bounds = array<i64: 16, 128>}, {pipeline_mode = #tpu.pipeline_mode<synchronous>, transform_indices = @transform_1, window_bounds = array<i64: 128, 128>}, {pipeline_mode = #tpu.pipeline_mode<synchronous>, transform_indices = @transform_2, window_bounds = array<i64: 1, 128>}, {transform_indices = @transform_3, window_bounds = array<i64: 16, 128>}]} {
    %c0 = arith.constant 0 : index
    %c0_0 = arith.constant 0 : index
    %0 = vector.load %arg1[%c0, %c0_0] : memref<16x128xf32, #tpu.memory_space<vmem>>, vector<16x128xf32>
    %c0_1 = arith.constant 0 : index
    %c0_2 = arith.constant 0 : index
    %1 = vector.load %arg2[%c0_1, %c0_2] : memref<128x128xf32, #tpu.memory_space<vmem>>, vector<128x128xf32>
    %cst = arith.constant dense<0.000000e+00> : vector<16x128xf32>
    %2 = tpu.matmul %0, %1, %cst {dimension_numbers = #tpu.dot_dimension_numbers<[1], [0], [0], [1], [0, 0, 1, 1], [], []>} : vector<16x128xf32>, vector<128x128xf32>, vector<16x128xf32> -> vector<16x128xf32>
    %c0_3 = arith.constant 0 : index
    %c0_4 = arith.constant 0 : index
    %3 = vector.load %arg3[%c0_3, %c0_4] : memref<1x128xf32, #tpu.memory_space<vmem>>, vector<1x128xf32>
    %cst_5 = arith.constant 0.0883883461 : f32
    %4 = vector.broadcast %cst_5 : f32 to vector<16x128xf32>
    %5 = arith.mulf %2, %4 : vector<16x128xf32>
    %6 = vector.broadcast %3 : vector<1x128xf32> to vector<16x128xf32>
    %7 = arith.addf %5, %6 : vector<16x128xf32>
    %c0_6 = arith.constant 0 : index
    %c0_7 = arith.constant 0 : index
    %8 = vector.load %arg4[%c0_6, %c0_7] : memref<16x128xf32, #tpu.memory_space<vmem>>, vector<16x128xf32>
    tpu.vector_store %arg4[%c0_6, %c0_7], %7 {strides = array<i32>} : memref<16x128xf32, #tpu.memory_space<vmem>>, vector<16x128xf32>,
    return
  }
  func.func @transform_0(%arg0: i32) -> (i32, i32) {
    %c0_i32 = arith.constant 0 : i32
    %c0_i32_0 = arith.constant 0 : i32
    return %arg0, %c0_i32 : i32, i32
  }
  func.func @transform_1(%arg0: i32) -> (i32, i32) {
    %c0_i32 = arith.constant 0 : i32
    %c0_i32_0 = arith.constant 0 : i32
    %c0_i32_1 = arith.constant 0 : i32
    return %c0_i32, %c0_i32_0 : i32, i32
  }
  func.func @transform_2(%arg0: i32) -> (i32, i32) {
    %c0_i32 = arith.constant 0 : i32
    %c0_i32_0 = arith.constant 0 : i32
    %c0_i32_1 = arith.constant 0 : i32
    return %c0_i32, %c0_i32_0 : i32, i32
  }
  func.func @transform_3(%arg0: i32) -> (i32, i32) {
    %c0_i32 = arith.constant 0 : i32
    %c0_i32_0 = arith.constant 0 : i32
    return %arg0, %c0_i32 : i32, i32
  }
}

</mosaic_0001>

<llo_original>
// kernel: tpu_custom_call.1
$region0: #{tpu_custom_call.1}
  #allocation0 [shape = 'u32[]', space=smem, size = 0x4, offset = 0x4, fixed_abs, tag = 'smem constant byte address 0x4 - core index']
  #allocation1 [shape = 'u32[72,128]{1,0:T(1,128)}', space=vmem, size = 0x9000, scoped, tag = 'internal scratch']
  %s0 = inlined_call_operand.hbm [shape: f32[16,128], index: 0, kind: input, shape index: {}]
  %s1 = inlined_call_operand.hbm [shape: f32[128,128], index: 1, kind: input, shape index: {}]
  %s2 = inlined_call_operand.vmem [shape: f32[1,128], index: 2, kind: input, shape index: {}]
  %s3 = inlined_call_operand.hbm [shape: f32[16,128], index: 3, kind: output, shape index: {}]
  %s4 = sld [smem:[#allocation0]]
  $region30: #{tpu_custom_call.1} parent=0
    _
  %s6 = ssub.s32 1, %s4
  %s7 = scalar_select 0, %s6, %s4
  $region1: #{tpu_custom_call.1} parent=0
    #allocation2 [shape = 'u8[8192]{0}', space=vmem, size = 0x2000, scoped, tag = 'input window, operand 0, single buffered']
    #allocation3 [shape = 's32[1]{0}', space=sflag, size = 0x4, scoped, tag = 'scoped memory for tpu_custom_call.1']
    #allocation4 [shape = 's32[1]{0}', space=sflag, size = 0x4, scoped, tag = 'scoped memory for tpu_custom_call.1']
    #allocation5 [shape = 'u8[65536]{0}', space=vmem, size = 0x10000, scoped, tag = 'input window, operand 1, single buffered']
    #allocation6 [shape = 's32[1]{0}', space=sflag, size = 0x4, scoped, tag = 'scoped memory for tpu_custom_call.1']
    #allocation7 [shape = 'u8[8192]{0}', space=vmem, size = 0x2000, scoped, tag = 'output window, operand 0, single buffered']
    %8 = vsyncpa [#allocation3], 0
    %9 = vsyncpa [#allocation6], 0
    %10 = vsyncpa [#allocation4], 0
    // Predicated region
    $region2: #{tpu_custom_call.1} parent=1 // pred_check
      _
    $region3: #{tpu_custom_call.1} parent=1 // pred_check_branch
      %12 = sbr.rel (0) target = $region5
    $region4: #{tpu_custom_call.1} parent=1 // pred_region
      %14 = vsyncadd [#allocation3], 0
      %s15 = sshll.u32 %s0, 4
      %s16 = int_to_ptr.hbm [resolvable:$true] %s15
      %s17 = sshll.u32 [#allocation2], 4
      %s18 = int_to_ptr.vmem [resolvable:$true] %s17
      %23 = dma.hbm_to_vmem [thread:$0]  %s16, 256, %s18, [#allocation3], 128, 128, 8
    $region5: #{tpu_custom_call.1} parent=1 // pred_fallthru
      _
    // Predicated region
    $region6: #{tpu_custom_call.1} parent=1 // pred_check
      _
    $region7: #{tpu_custom_call.1} parent=1 // pred_check_branch
      %25 = sbr.rel (0) target = $region9
    $region8: #{tpu_custom_call.1} parent=1 // pred_region
      %27 = vsyncadd [#allocation6], 0
      %s28 = sshll.u32 %s1, 4
      %s29 = int_to_ptr.hbm [resolvable:$true] %s28
      %s30 = sshll.u32 [#allocation5], 4
      %s31 = int_to_ptr.vmem [resolvable:$true] %s30
      %36 = dma.hbm_to_vmem [thread:$0]  %s29, 2048, %s31, [#allocation6], 128, 128, 8
    $region9: #{tpu_custom_call.1} parent=1 // pred_fallthru
      _
    // Predicated region
    $region10: #{tpu_custom_call.1} parent=1 // pred_check
      _
    $region11: #{tpu_custom_call.1} parent=1 // pred_check_branch
      %38 = sbr.rel (0) target = $region13
    $region12: #{tpu_custom_call.1} parent=1 // pred_region
      _
    $region13: #{tpu_custom_call.1} parent=1 // pred_fallthru
      _
    // Predicated region
    $region14: #{tpu_custom_call.1} parent=1 // pred_check
      _
    $region15: #{tpu_custom_call.1} parent=1 // pred_check_branch
      %40 = sbr.rel (0) target = $region17
    $region16: #{tpu_custom_call.1} parent=1 // pred_region
      %42 = dma.done [#allocation3], 256
    $region17: #{tpu_custom_call.1} parent=1 // pred_fallthru
      _
    // Predicated region
    $region18: #{tpu_custom_call.1} parent=1 // pred_check
      _
    $region19: #{tpu_custom_call.1} parent=1 // pred_check_branch
      %44 = sbr.rel (0) target = $region21
    $region20: #{tpu_custom_call.1} parent=1 // pred_region
      %46 = dma.done [#allocation6], 2048
    $region21: #{tpu_custom_call.1} parent=1 // pred_fallthru
      _
    %v47 = vld [vmem:[#allocation2] sm:$0xff]
    %v48 = vld [vmem:[#allocation2 + $0x8] sm:$0xff]
    %v49 = vld [vmem:[#allocation5] sm:$0xff]
    %v50 = vld [vmem:[#allocation5 + $0x8] sm:$0xff]
    %v51 = vld [vmem:[#allocation5 + $0x10] sm:$0xff]
    %v52 = vld [vmem:[#allocation5 + $0x18] sm:$0xff]
    %v53 = vld [vmem:[#allocation5 + $0x20] sm:$0xff]
    %v54 = vld [vmem:[#allocation5 + $0x28] sm:$0xff]
    %v55 = vld [vmem:[#allocation5 + $0x30] sm:$0xff]
    %v56 = vld [vmem:[#allocation5 + $0x38] sm:$0xff]
    %v57 = vld [vmem:[#allocation5 + $0x40] sm:$0xff]
    %v58 = vld [vmem:[#allocation5 + $0x48] sm:$0xff]
    %v59 = vld [vmem:[#allocation5 + $0x50] sm:$0xff]
    %v60 = vld [vmem:[#allocation5 + $0x58] sm:$0xff]
    %v61 = vld [vmem:[#allocation5 + $0x60] sm:$0xff]
    %v62 = vld [vmem:[#allocation5 + $0x68] sm:$0xff]
    %v63 = vld [vmem:[#allocation5 + $0x70] sm:$0xff]
    %v64 = vld [vmem:[#allocation5 + $0x78] sm:$0xff]
    %65 = vmatpush.msra.mxu0 %v64
    %66 = vmatpush.msra.mxu0 %v63
    %67 = vmatpush.msra.mxu0 %v62
    %68 = vmatpush.msra.mxu0 %v61
    %69 = vmatpush.msra.mxu0 %v60
    %70 = vmatpush.msra.mxu0 %v59
    %71 = vmatpush.msra.mxu0 %v58
    %72 = vmatpush.msra.mxu0 %v57
    %73 = vmatpush.msra.mxu0 %v56
    %74 = vmatpush.msra.mxu0 %v55
    %75 = vmatpush.msra.mxu0 %v54
    %76 = vmatpush.msra.mxu0 %v53
    %77 = vmatpush.msra.mxu0 %v52
    %78 = vmatpush.msra.mxu0 %v51
    %79 = vmatpush.msra.mxu0 %v50
    %80 = vmatpush.msra.mxu0 %v49
    %81 = vmatmul.f32.gmra.mxu0 %v47
    %v82 = vpop.f32.mrf.mxu0
    %v83 = vadd.f32 0.0, %v82
    %84 = vmatmul.f32.gmra.mxu0 %v48
    %v85 = vpop.f32.mrf.mxu0
    %v86 = vadd.f32 0.0, %v85
    %87 = vdwg.mxu0
    %v88 = vld [vmem:[%s2] sm:$0x1]
    %v89 = vmul.f32 %v83, 0.088388346
    %v90 = vmul.f32 %v86, 0.088388346
    %v92 = vperm.slane %v88, 0
    %v94 = vadd.f32 %v89, %v92
    %v95 = vadd.f32 %v90, %v92
    %96 = vst [vmem:[#allocation7] sm:$0xff] %v94
    %97 = vst [vmem:[#allocation7 + $0x8] sm:$0xff] %v95
    // Predicated region
    $region22: #{tpu_custom_call.1} parent=1 // pred_check
      _
    $region23: #{tpu_custom_call.1} parent=1 // pred_check_branch
      %99 = sbr.rel (0) target = $region25
    $region24: #{tpu_custom_call.1} parent=1 // pred_region
      %101 = vsyncadd [#allocation4], 0
      %s102 = sshll.u32 [#allocation7], 4
      %s103 = int_to_ptr.vmem [resolvable:$true] %s102
      %s104 = sshll.u32 %s3, 4
      %s105 = int_to_ptr.hbm [resolvable:$true] %s104
      %110 = dma.vmem_to_hbm [thread:$0]  %s103, 256, %s105, [#allocation4], 128, 128, 8
    $region25: #{tpu_custom_call.1} parent=1 // pred_fallthru
      _
    // Predicated region
    $region26: #{tpu_custom_call.1} parent=1 // pred_check
      _
    $region27: #{tpu_custom_call.1} parent=1 // pred_check_branch
      %112 = sbr.rel (0) target = $region29
    $region28: #{tpu_custom_call.1} parent=1 // pred_region
      %114 = dma.done [#allocation4], 256
    $region29: #{tpu_custom_call.1} parent=1 // pred_fallthru
      _
    %115 = vsyncpa [#allocation3], 1
    %116 = vsyncpa [#allocation6], 1
    %117 = vsyncpa [#allocation4], 1

</llo_original>
